<compile_context>
chip_gen: v7x
topology: tpu7x:2x2x1
jax: 0.10.0
libtpu: 0.0.40
codegen_flags: <defaults>
</compile_context>

<pallas_src>
from functools import partial

import jax
import jax.numpy as jnp
from jax.experimental import pallas as pl
from jax.experimental.pallas import tpu as pltpu


def critic_kernel(x_ref, w1_ref, b1_ref, w2_ref, b2_ref, w3_ref, b3_ref,
                  a1_ref, a2_ref, o_ref):
    """Fused 3-layer MLP with PReLU activations on one (TB, *) batch tile."""
    x = x_ref[...]                       # (TB, input_dims) f32

    # PReLU slopes from SMEM (scalar path).
    a1 = a1_ref[0, 0]
    a2 = a2_ref[0, 0]

    # ---- layer 1: Linear + (Dropout=id) + PReLU -------------------------
    h1 = jnp.dot(x, w1_ref[...], preferred_element_type=jnp.float32) + b1_ref[...]
    h1 = jnp.where(h1 > 0, h1, a1 * h1)

    # ---- layer 2: Linear + (Dropout=id) + PReLU -------------------------
    h2 = jnp.dot(h1, w2_ref[...], preferred_element_type=jnp.float32) + b2_ref[...]
    h2 = jnp.where(h2 > 0, h2, a2 * h2)

    # ---- layer 3: Linear (output dim padded to a lane-dense multiple of 128)
    out = jnp.dot(h2, w3_ref[...], preferred_element_type=jnp.float32) + b3_ref[...]
    o_ref[...] = out.astype(o_ref.dtype)


@partial(jax.jit, static_argnames=("block_b",))
def critic_forward(state, params, *, block_b=512):
    """Batched, pipelined forward pass.  state: [B, input_dims] (f32)."""
    w1, b1, a1, w2, b2, a2, w3, b3 = params
    B, input_dims = state.shape
    fc1 = w1.shape[1]
    fc2 = w2.shape[1]
    n_actions = w3.shape[1]

    # Lane-dense output: pad last Linear's output dim up to a multiple of 128
    # so final stores are unmasked `vst` (biggest single layout lever).
    n_pad = pl.cdiv(n_actions, 128) * 128
    if n_pad != n_actions:
        w3 = jnp.pad(w3, ((0, 0), (0, n_pad - n_actions)))
        b3 = jnp.pad(b3, ((0, 0), (0, n_pad - n_actions)))

    # Batch tile: a multiple of 8 sublanes, capped at block_b; pad B to fit.
    tb = min(block_b, max(8, ((B + 7) // 8) * 8))
    b_pad = pl.cdiv(B, tb) * tb
    if b_pad != B:
        state = jnp.pad(state, ((0, b_pad - B), (0, 0)))

    grid = (b_pad // tb,)

    def resident(shape):
        # Whole-array block whose index never changes -> stays VMEM-resident.
        return pl.BlockSpec(shape, lambda i: (0, 0))

    smem_scalar = pl.BlockSpec((1, 1), lambda i: (0, 0),
                               memory_space=pltpu.MemorySpace.SMEM)

    out = pl.pallas_call(
        critic_kernel,
        out_shape=jax.ShapeDtypeStruct((b_pad, n_pad), jnp.float32),
        grid=grid,
        in_specs=[
            pl.BlockSpec((tb, input_dims), lambda i: (i, 0)),   # x tile
            resident((input_dims, fc1)), resident((1, fc1)),    # w1, b1
            resident((fc1, fc2)),        resident((1, fc2)),    # w2, b2
            resident((fc2, n_pad)),      resident((1, n_pad)),  # w3, b3 (padded)
            smem_scalar, smem_scalar,                           # a1, a2 (PReLU)
        ],
        out_specs=pl.BlockSpec((tb, n_pad), lambda i: (i, 0)),
        compiler_params=pltpu.CompilerParams(
            dimension_semantics=("parallel",)),
    )(state, w1, b1, w2, b2, w3, b3, a1, a2)

    return out[:B, :n_actions]


def init_critic_params(key, input_dims, fc1_dims, fc2_dims, n_actions):
    """Deterministic synthetic init (PyTorch-Linear-like uniform bounds)."""
    ks = jax.random.split(key, 6)

    def linear(kw, kb, fan_in, fan_out):
        bound = 1.0 / jnp.sqrt(fan_in)
        w = jax.random.uniform(kw, (fan_in, fan_out), jnp.float32, -bound, bound)
        b = jax.random.uniform(kb, (1, fan_out), jnp.float32, -bound, bound)
        return w, b

    w1, b1 = linear(ks[0], ks[1], input_dims, fc1_dims)
    w2, b2 = linear(ks[2], ks[3], fc1_dims, fc2_dims)
    w3, b3 = linear(ks[4], ks[5], fc2_dims, n_actions)
    # nn.PReLU() default: single learnable slope initialized to 0.25
    a1 = jnp.full((1, 1), 0.25, jnp.float32)
    a2 = jnp.full((1, 1), 0.25, jnp.float32)
    return (w1, b1, a1, w2, b2, a2, w3, b3)


def critic_reference(state, params):
    """Pure-JAX reference for correctness check (eval-mode dropout = id)."""
    w1, b1, a1, w2, b2, a2, w3, b3 = params
    h1 = state @ w1 + b1
    h1 = jnp.where(h1 > 0, h1, a1 * h1)
    h2 = h1 @ w2 + b2
    h2 = jnp.where(h2 > 0, h2, a2 * h2)
    return h2 @ w3 + b3


if __name__ == "__main__":
    # Small shapes consistent with the module: state = [batch, input_dims]
    B, input_dims, fc1_dims, fc2_dims, n_actions = 2, 16, 32, 32, 8

    key = jax.random.PRNGKey(0)
    k_state, k_params = jax.random.split(key)
    state = jax.random.normal(k_state, (B, input_dims), dtype=jnp.float32)
    params = init_critic_params(k_params, input_dims, fc1_dims, fc2_dims, n_actions)

    out = critic_forward(state, params)
    out = jax.block_until_ready(out)

    ref = critic_reference(state, params)
    assert out.shape == (B, n_actions), out.shape
    assert jnp.allclose(out, ref, atol=1e-5, rtol=1e-5), "mismatch vs reference"

    # Also exercise a realistic SAC batch that needs multiple grid steps.
    big_state = jax.random.normal(jax.random.PRNGKey(1), (1000, input_dims),
                                  dtype=jnp.float32)
    big_out = jax.block_until_ready(critic_forward(big_state, params, block_b=256))
    big_ref = critic_reference(big_state, params)
    assert big_out.shape == (1000, n_actions)
    assert jnp.allclose(big_out, big_ref, atol=1e-5, rtol=1e-5), "big-batch mismatch"

    print("KERNEL_OK")
</pallas_src>

<mosaic_0001>
module attributes {stable_mosaic.version = 11 : i64} {
  func.func @critic_kernel(%arg0: i32, %arg1: memref<8x16xf32, #tpu.memory_space<vmem>>, %arg2: memref<16x32xf32, #tpu.memory_space<vmem>>, %arg3: memref<1x32xf32, #tpu.memory_space<vmem>>, %arg4: memref<32x32xf32, #tpu.memory_space<vmem>>, %arg5: memref<1x32xf32, #tpu.memory_space<vmem>>, %arg6: memref<32x128xf32, #tpu.memory_space<vmem>>, %arg7: memref<1x128xf32, #tpu.memory_space<vmem>>, %arg8: memref<1x1xf32, #tpu.memory_space<smem>>, %arg9: memref<1x1xf32, #tpu.memory_space<smem>>, %arg10: memref<8x128xf32, #tpu.memory_space<vmem>>) attributes {dimension_semantics = [#tpu.dimension_semantics<parallel>], iteration_bounds = array<i64: 1>, scalar_prefetch = 0 : i64, scratch_operands = 0 : i64, tpu.core_type = #tpu.core_type<tc>, window_params = [{transform_indices = @transform_0, window_bounds = array<i64: 8, 16>}, {pipeline_mode = #tpu.pipeline_mode<synchronous>, transform_indices = @transform_1, window_bounds = array<i64: 16, 32>}, {pipeline_mode = #tpu.pipeline_mode<synchronous>, transform_indices = @transform_2, window_bounds = array<i64: 1, 32>}, {pipeline_mode = #tpu.pipeline_mode<synchronous>, transform_indices = @transform_3, window_bounds = array<i64: 32, 32>}, {pipeline_mode = #tpu.pipeline_mode<synchronous>, transform_indices = @transform_4, window_bounds = array<i64: 1, 32>}, {pipeline_mode = #tpu.pipeline_mode<synchronous>, transform_indices = @transform_5, window_bounds = array<i64: 32, 128>}, {pipeline_mode = #tpu.pipeline_mode<synchronous>, transform_indices = @transform_6, window_bounds = array<i64: 1, 128>}, {transform_indices = @transform_7, window_bounds = array<i64: 1, 1>}, {transform_indices = @transform_8, window_bounds = array<i64: 1, 1>}, {transform_indices = @transform_9, window_bounds = array<i64: 8, 128>}]} {
    %c0 = arith.constant 0 : index
    %c0_0 = arith.constant 0 : index
    %0 = vector.load %arg1[%c0, %c0_0] : memref<8x16xf32, #tpu.memory_space<vmem>>, vector<8x16xf32>
    %c0_1 = arith.constant 0 : index
    %c0_2 = arith.constant 0 : index
    %1 = memref.load %arg8[%c0_1, %c0_2] : memref<1x1xf32, #tpu.memory_space<smem>>
    %c0_3 = arith.constant 0 : index
    %c0_4 = arith.constant 0 : index
    %2 = memref.load %arg9[%c0_3, %c0_4] : memref<1x1xf32, #tpu.memory_space<smem>>
    %c0_5 = arith.constant 0 : index
    %c0_6 = arith.constant 0 : index
    %3 = vector.load %arg2[%c0_5, %c0_6] : memref<16x32xf32, #tpu.memory_space<vmem>>, vector<16x32xf32>
    %cst = arith.constant dense<0.000000e+00> : vector<8x32xf32>
    %4 = tpu.matmul %0, %3, %cst {dimension_numbers = #tpu.dot_dimension_numbers<[1], [0], [0], [1], [0, 0, 1, 1], [], []>} : vector<8x16xf32>, vector<16x32xf32>, vector<8x32xf32> -> vector<8x32xf32>
    %c0_7 = arith.constant 0 : index
    %c0_8 = arith.constant 0 : index
    %5 = vector.load %arg3[%c0_7, %c0_8] : memref<1x32xf32, #tpu.memory_space<vmem>>, vector<1x32xf32>
    %6 = vector.broadcast %5 : vector<1x32xf32> to vector<8x32xf32>
    %7 = arith.addf %4, %6 : vector<8x32xf32>
    %cst_9 = arith.constant 0.000000e+00 : f32
    %8 = vector.broadcast %cst_9 : f32 to vector<8x32xf32>
    %9 = arith.cmpf ogt, %7, %8 : vector<8x32xf32>
    %10 = vector.broadcast %1 : f32 to vector<8x32xf32>
    %11 = arith.mulf %10, %7 : vector<8x32xf32>
    %12 = arith.select %9, %7, %11 : vector<8x32xi1>, vector<8x32xf32>
    %c0_10 = arith.constant 0 : index
    %c0_11 = arith.constant 0 : index
    %13 = vector.load %arg4[%c0_10, %c0_11] : memref<32x32xf32, #tpu.memory_space<vmem>>, vector<32x32xf32>
    %cst_12 = arith.constant dense<0.000000e+00> : vector<8x32xf32>
    %14 = tpu.matmul %12, %13, %cst_12 {dimension_numbers = #tpu.dot_dimension_numbers<[1], [0], [0], [1], [0, 0, 1, 1], [], []>} : vector<8x32xf32>, vector<32x32xf32>, vector<8x32xf32> -> vector<8x32xf32>
    %c0_13 = arith.constant 0 : index
    %c0_14 = arith.constant 0 : index
    %15 = vector.load %arg5[%c0_13, %c0_14] : memref<1x32xf32, #tpu.memory_space<vmem>>, vector<1x32xf32>
    %16 = vector.broadcast %15 : vector<1x32xf32> to vector<8x32xf32>
    %17 = arith.addf %14, %16 : vector<8x32xf32>
    %cst_15 = arith.constant 0.000000e+00 : f32
    %18 = vector.broadcast %cst_15 : f32 to vector<8x32xf32>
    %19 = arith.cmpf ogt, %17, %18 : vector<8x32xf32>
    %20 = vector.broadcast %2 : f32 to vector<8x32xf32>
    %21 = arith.mulf %20, %17 : vector<8x32xf32>
    %22 = arith.select %19, %17, %21 : vector<8x32xi1>, vector<8x32xf32>
    %c0_16 = arith.constant 0 : index
    %c0_17 = arith.constant 0 : index
    %23 = vector.load %arg6[%c0_16, %c0_17] : memref<32x128xf32, #tpu.memory_space<vmem>>, vector<32x128xf32>
    %cst_18 = arith.constant dense<0.000000e+00> : vector<8x128xf32>
    %24 = tpu.matmul %22, %23, %cst_18 {dimension_numbers = #tpu.dot_dimension_numbers<[1], [0], [0], [1], [0, 0, 1, 1], [], []>} : vector<8x32xf32>, vector<32x128xf32>, vector<8x128xf32> -> vector<8x128xf32>
    %c0_19 = arith.constant 0 : index
    %c0_20 = arith.constant 0 : index
    %25 = vector.load %arg7[%c0_19, %c0_20] : memref<1x128xf32, #tpu.memory_space<vmem>>, vector<1x128xf32>
    %26 = vector.broadcast %25 : vector<1x128xf32> to vector<8x128xf32>
    %27 = arith.addf %24, %26 : vector<8x128xf32>
    %c0_21 = arith.constant 0 : index
    %c0_22 = arith.constant 0 : index
    %28 = vector.load %arg10[%c0_21, %c0_22] : memref<8x128xf32, #tpu.memory_space<vmem>>, vector<8x128xf32>
    tpu.vector_store %arg10[%c0_21, %c0_22], %27 {strides = array<i32>} : memref<8x128xf32, #tpu.memory_space<vmem>>, vector<8x128xf32>,
    return
  }
  func.func @transform_0(%arg0: i32) -> (i32, i32) {
    %c0_i32 = arith.constant 0 : i32
    %c0_i32_0 = arith.constant 0 : i32
    return %arg0, %c0_i32 : i32, i32
  }
  func.func @transform_1(%arg0: i32) -> (i32, i32) {
    %c0_i32 = arith.constant 0 : i32
    %c0_i32_0 = arith.constant 0 : i32
    %c0_i32_1 = arith.constant 0 : i32
    return %c0_i32, %c0_i32_0 : i32, i32
  }
  func.func @transform_2(%arg0: i32) -> (i32, i32) {
    %c0_i32 = arith.constant 0 : i32
    %c0_i32_0 = arith.constant 0 : i32
    %c0_i32_1 = arith.constant 0 : i32
    return %c0_i32, %c0_i32_0 : i32, i32
  }
  func.func @transform_3(%arg0: i32) -> (i32, i32) {
    %c0_i32 = arith.constant 0 : i32
    %c0_i32_0 = arith.constant 0 : i32
    %c0_i32_1 = arith.constant 0 : i32
    return %c0_i32, %c0_i32_0 : i32, i32
  }
  func.func @transform_4(%arg0: i32) -> (i32, i32) {
    %c0_i32 = arith.constant 0 : i32
    %c0_i32_0 = arith.constant 0 : i32
    %c0_i32_1 = arith.constant 0 : i32
    return %c0_i32, %c0_i32_0 : i32, i32
  }
  func.func @transform_5(%arg0: i32) -> (i32, i32) {
    %c0_i32 = arith.constant 0 : i32
    %c0_i32_0 = arith.constant 0 : i32
    %c0_i32_1 = arith.constant 0 : i32
    return %c0_i32, %c0_i32_0 : i32, i32
  }
  func.func @transform_6(%arg0: i32) -> (i32, i32) {
    %c0_i32 = arith.constant 0 : i32
    %c0_i32_0 = arith.constant 0 : i32
    %c0_i32_1 = arith.constant 0 : i32
    return %c0_i32, %c0_i32_0 : i32, i32
  }
  func.func @transform_7(%arg0: i32) -> (i32, i32) {
    %c0_i32 = arith.constant 0 : i32
    %c0_i32_0 = arith.constant 0 : i32
    %c0_i32_1 = arith.constant 0 : i32
    return %c0_i32, %c0_i32_0 : i32, i32
  }
  func.func @transform_8(%arg0: i32) -> (i32, i32) {
    %c0_i32 = arith.constant 0 : i32
    %c0_i32_0 = arith.constant 0 : i32
    %c0_i32_1 = arith.constant 0 : i32
    return %c0_i32, %c0_i32_0 : i32, i32
  }
  func.func @transform_9(%arg0: i32) -> (i32, i32) {
    %c0_i32 = arith.constant 0 : i32
    %c0_i32_0 = arith.constant 0 : i32
    return %arg0, %c0_i32 : i32, i32
  }
}

</mosaic_0001>

<llo_original>
// kernel: critic_forward.1
$region0: #{critic_forward.1}
  #allocation0 [shape = 'u32[]', space=smem, size = 0x4, offset = 0x4, fixed_abs, tag = 'smem constant byte address 0x4 - core index']
  #allocation1 [shape = 'u32[144,128]{1,0:T(1,128)}', space=vmem, size = 0x12000, scoped, tag = 'internal scratch']
  #allocation2 [shape = 'f32[1,1]{1,0:T(1,128)S(6)}', space=smem, size = 0x200, scoped, tag = 'scoped memory for critic_forward.1']
  #allocation3 [shape = 'f32[1,1]{1,0:T(1,128)S(6)}', space=smem, size = 0x200, scoped, tag = 'scoped memory for critic_forward.1']
  %s0 = inlined_call_operand.vmem [shape: f32[8,16], index: 0, kind: input, shape index: {}]
  %s1 = inlined_call_operand.vmem [shape: f32[16,32], index: 1, kind: input, shape index: {}]
  %s2 = inlined_call_operand.vmem [shape: f32[1,32], index: 2, kind: input, shape index: {}]
  %s3 = inlined_call_operand.vmem [shape: f32[32,32], index: 3, kind: input, shape index: {}]
  %s4 = inlined_call_operand.vmem [shape: f32[1,32], index: 4, kind: input, shape index: {}]
  %s5 = inlined_call_operand.vmem [shape: f32[32,128], index: 5, kind: input, shape index: {}]
  %s6 = inlined_call_operand.vmem [shape: f32[1,128], index: 6, kind: input, shape index: {}]
  %s7 = inlined_call_operand.<no memory space> [shape: f32[1,1], index: 7, kind: input, shape index: {}]
  %s8 = inlined_call_operand.<no memory space> [shape: f32[1,1], index: 8, kind: input, shape index: {}]
  %s9 = inlined_call_operand.vmem [shape: f32[8,128], index: 9, kind: output, shape index: {}]
  %s10 = sld [smem:[#allocation0]]
  $region46: #{critic_forward.1} parent=0
    _
  %s12 = ssub.s32 1, %s10
  %s13 = scalar_select 0, %s12, %s10
  %14 = sst [smem:[#allocation2]] %s7
  %15 = sst [smem:[#allocation3]] %s8
  // Predicated region
  $region2: #{critic_forward.1} parent=0 // pred_check
    _
  $region3: #{critic_forward.1} parent=0 // pred_check_branch
    %17 = sbr.rel (0) target = $region5
  $region4: #{critic_forward.1} parent=0 // pred_region
    _
  $region5: #{critic_forward.1} parent=0 // pred_fallthru
    _
  // Predicated region
  $region6: #{critic_forward.1} parent=0 // pred_check
    _
  $region7: #{critic_forward.1} parent=0 // pred_check_branch
    %19 = sbr.rel (0) target = $region9
  $region8: #{critic_forward.1} parent=0 // pred_region
    _
  $region9: #{critic_forward.1} parent=0 // pred_fallthru
    _
  // Predicated region
  $region10: #{critic_forward.1} parent=0 // pred_check
    _
  $region11: #{critic_forward.1} parent=0 // pred_check_branch
    %21 = sbr.rel (0) target = $region13
  $region12: #{critic_forward.1} parent=0 // pred_region
    _
  $region13: #{critic_forward.1} parent=0 // pred_fallthru
    _
  // Predicated region
  $region14: #{critic_forward.1} parent=0 // pred_check
    _
  $region15: #{critic_forward.1} parent=0 // pred_check_branch
    %23 = sbr.rel (0) target = $region17
  $region16: #{critic_forward.1} parent=0 // pred_region
    _
  $region17: #{critic_forward.1} parent=0 // pred_fallthru
    _
  // Predicated region
  $region18: #{critic_forward.1} parent=0 // pred_check
    _
  $region19: #{critic_forward.1} parent=0 // pred_check_branch
    %25 = sbr.rel (0) target = $region21
  $region20: #{critic_forward.1} parent=0 // pred_region
    _
  $region21: #{critic_forward.1} parent=0 // pred_fallthru
    _
  // Predicated region
  $region22: #{critic_forward.1} parent=0 // pred_check
    _
  $region23: #{critic_forward.1} parent=0 // pred_check_branch
    %27 = sbr.rel (0) target = $region25
  $region24: #{critic_forward.1} parent=0 // pred_region
    _
  $region25: #{critic_forward.1} parent=0 // pred_fallthru
    _
  // Predicated region
  $region26: #{critic_forward.1} parent=0 // pred_check
    _
  $region27: #{critic_forward.1} parent=0 // pred_check_branch
    %29 = sbr.rel (0) target = $region29
  $region28: #{critic_forward.1} parent=0 // pred_region
    _
  $region29: #{critic_forward.1} parent=0 // pred_fallthru
    _
  // Predicated region
  $region30: #{critic_forward.1} parent=0 // pred_check
    _
  $region31: #{critic_forward.1} parent=0 // pred_check_branch
    %31 = sbr.rel (0) target = $region33
  $region32: #{critic_forward.1} parent=0 // pred_region
    _
  $region33: #{critic_forward.1} parent=0 // pred_fallthru
    _
  // Predicated region
  $region34: #{critic_forward.1} parent=0 // pred_check
    _
  $region35: #{critic_forward.1} parent=0 // pred_check_branch
    %33 = sbr.rel (0) target = $region37
  $region36: #{critic_forward.1} parent=0 // pred_region
    _
  $region37: #{critic_forward.1} parent=0 // pred_fallthru
    _
  %v34 = vld [vmem:[%s0] sm:$0xff]
  %s35 = sld [smem:[#allocation2]]
  %s36 = sld [smem:[#allocation3]]
  %v37 = vld [vmem:[%s1] sm:$0xff]
  %v38 = vld [vmem:[%s1 + $0x8] sm:$0xff]
  %v39 = vld [vmem:[%s2] sm:$0x1]
  %v41 = vlaneseq
  %v42 = vshrl.u32 %v41, 7
  %v43 = vsub.s32 0, %v42
  %v44 = vrot.slane %v39, %v43
  %vm46 = vcmask 130048
  %v48 = vsel %vm46, %v34, 0
  %50 = vmatprep.subr.mxu0 0.0
  %51 = vmatpush1.msra.mxu0 %v37
  %52 = vmatprep.subr.mxu0 0.0
  %53 = vmatpush1.msra.mxu0 %v38
  %54 = vmatprep.subr.mxu0 0.0
  %55 = vmatpush1.msra.mxu0 0.0
  %56 = vmatprep.subr.mxu0 0.0
  %57 = vmatpush1.msra.mxu0 0.0
  %58 = vmatprep.subr.mxu0 0.0
  %59 = vmatpush1.msra.mxu0 0.0
  %60 = vmatprep.subr.mxu0 0.0
  %61 = vmatpush1.msra.mxu0 0.0
  %62 = vmatprep.subr.mxu0 0.0
  %63 = vmatpush1.msra.mxu0 0.0
  %64 = vmatprep.subr.mxu0 0.0
  %65 = vmatpush1.msra.mxu0 0.0
  %66 = vmatprep.subr.mxu0 0.0
  %67 = vmatpush1.msra.mxu0 0.0
  %68 = vmatprep.subr.mxu0 0.0
  %69 = vmatpush1.msra.mxu0 0.0
  %70 = vmatprep.subr.mxu0 0.0
  %71 = vmatpush1.msra.mxu0 0.0
  %72 = vmatprep.subr.mxu0 0.0
  %73 = vmatpush1.msra.mxu0 0.0
  %74 = vmatprep.subr.mxu0 0.0
  %75 = vmatpush1.msra.mxu0 0.0
  %76 = vmatprep.subr.mxu0 0.0
  %77 = vmatpush1.msra.mxu0 0.0
  %78 = vmatprep.subr.mxu0 0.0
  %79 = vmatpush1.msra.mxu0 0.0
  %80 = vmatprep.subr.mxu0 0.0
  %81 = vmatpush1.msra.mxu0 0.0
  %82 = vmatprep.subr.mxu0 0.0
  %83 = vmatpush1.msra.mxu0 0.0
  %84 = vmatprep.subr.mxu0 0.0
  %85 = vmatpush1.msra.mxu0 0.0
  %86 = vmatprep.subr.mxu0 0.0
  %87 = vmatpush1.msra.mxu0 0.0
  %88 = vmatprep.subr.mxu0 0.0
  %89 = vmatpush1.msra.mxu0 0.0
  %90 = vmatprep.subr.mxu0 0.0
  %91 = vmatpush1.msra.mxu0 0.0
  %92 = vmatprep.subr.mxu0 0.0
  %93 = vmatpush1.msra.mxu0 0.0
  %94 = vmatprep.subr.mxu0 0.0
  %95 = vmatpush1.msra.mxu0 0.0
  %96 = vmatprep.subr.mxu0 0.0
  %97 = vmatpush1.msra.mxu0 0.0
  %98 = vmatprep.subr.mxu0 0.0
  %99 = vmatpush1.msra.mxu0 0.0
  %100 = vmatprep.subr.mxu0 0.0
  %101 = vmatpush1.msra.mxu0 0.0
  %102 = vmatprep.subr.mxu0 0.0
  %103 = vmatpush1.msra.mxu0 0.0
  %104 = vmatprep.subr.mxu0 0.0
  %105 = vmatpush1.msra.mxu0 0.0
  %106 = vmatprep.subr.mxu0 0.0
  %107 = vmatpush1.msra.mxu0 0.0
  %108 = vmatprep.subr.mxu0 0.0
  %109 = vmatpush1.msra.mxu0 0.0
  %110 = vmatprep.subr.mxu0 0.0
  %111 = vmatpush1.msra.mxu0 0.0
  %112 = vmatprep.subr.mxu0 0.0
  %113 = vmatpush1.msra.mxu0 0.0
  %114 = vmatprep.mubr.f32.mxu0 0.0
  %115 = vmatmul.mubr.f32.gmra.mrb[0].mxu0 %v48
  %v116 = vpop.f32.mrb[0].mxu0
  %v117 = vadd.f32 %v44, %v116
  %v118 = vpop.f32.mrb[0].mxu0
  %119 = vdwg.mxu0
  %vm120 = vcmp.gt.f32.partialorder %v117, 0.0
  %v121 = vstv %s35
  %v122 = vmul.f32 %v121, %v117
  %v123 = vsel %vm120, %v117, %v122
  %v124 = vld [vmem:[%s3] sm:$0xff]
  %v125 = vld [vmem:[%s3 + $0x8] sm:$0xff]
  %v126 = vld [vmem:[%s3 + $0x10] sm:$0xff]
  %v127 = vld [vmem:[%s3 + $0x18] sm:$0xff]
  %v128 = vld [vmem:[%s4] sm:$0x1]
  %v130 = vlaneseq
  %v131 = vshrl.u32 %v130, 7
  %v132 = vsub.s32 0, %v131
  %v133 = vrot.slane %v128, %v132
  %vm135 = vcmask 261120
  %v137 = vsel %vm135, %v123, 0
  %139 = vmatprep.subr.mxu0 0.0
  %140 = vmatpush1.msra.mxu0 %v124
  %141 = vmatprep.subr.mxu0 0.0
  %142 = vmatpush1.msra.mxu0 %v125
  %143 = vmatprep.subr.mxu0 0.0
  %144 = vmatpush1.msra.mxu0 %v126
  %145 = vmatprep.subr.mxu0 0.0
  %146 = vmatpush1.msra.mxu0 %v127
  %147 = vmatprep.subr.mxu0 0.0
  %148 = vmatpush1.msra.mxu0 0.0
  %149 = vmatprep.subr.mxu0 0.0
  %150 = vmatpush1.msra.mxu0 0.0
  %151 = vmatprep.subr.mxu0 0.0
  %152 = vmatpush1.msra.mxu0 0.0
  %153 = vmatprep.subr.mxu0 0.0
  %154 = vmatpush1.msra.mxu0 0.0
  %155 = vmatprep.subr.mxu0 0.0
  %156 = vmatpush1.msra.mxu0 0.0
  %157 = vmatprep.subr.mxu0 0.0
  %158 = vmatpush1.msra.mxu0 0.0
  %159 = vmatprep.subr.mxu0 0.0
  %160 = vmatpush1.msra.mxu0 0.0
  %161 = vmatprep.subr.mxu0 0.0
  %162 = vmatpush1.msra.mxu0 0.0
  %163 = vmatprep.subr.mxu0 0.0
  %164 = vmatpush1.msra.mxu0 0.0
  %165 = vmatprep.subr.mxu0 0.0
  %166 = vmatpush1.msra.mxu0 0.0
  %167 = vmatprep.subr.mxu0 0.0
  %168 = vmatpush1.msra.mxu0 0.0
  %169 = vmatprep.subr.mxu0 0.0
  %170 = vmatpush1.msra.mxu0 0.0
  %171 = vmatprep.subr.mxu0 0.0
  %172 = vmatpush1.msra.mxu0 0.0
  %173 = vmatprep.subr.mxu0 0.0
  %174 = vmatpush1.msra.mxu0 0.0
  %175 = vmatprep.subr.mxu0 0.0
  %176 = vmatpush1.msra.mxu0 0.0
  %177 = vmatprep.subr.mxu0 0.0
  %178 = vmatpush1.msra.mxu0 0.0
  %179 = vmatprep.subr.mxu0 0.0
  %180 = vmatpush1.msra.mxu0 0.0
  %181 = vmatprep.subr.mxu0 0.0
  %182 = vmatpush1.msra.mxu0 0.0
  %183 = vmatprep.subr.mxu0 0.0
  %184 = vmatpush1.msra.mxu0 0.0
  %185 = vmatprep.subr.mxu0 0.0
  %186 = vmatpush1.msra.mxu0 0.0
  %187 = vmatprep.subr.mxu0 0.0
  %188 = vmatpush1.msra.mxu0 0.0
  %189 = vmatprep.subr.mxu0 0.0
  %190 = vmatpush1.msra.mxu0 0.0
  %191 = vmatprep.subr.mxu0 0.0
  %192 = vmatpush1.msra.mxu0 0.0
  %193 = vmatprep.subr.mxu0 0.0
  %194 = vmatpush1.msra.mxu0 0.0
  %195 = vmatprep.subr.mxu0 0.0
  %196 = vmatpush1.msra.mxu0 0.0
  %197 = vmatprep.subr.mxu0 0.0
  %198 = vmatpush1.msra.mxu0 0.0
  %199 = vmatprep.subr.mxu0 0.0
  %200 = vmatpush1.msra.mxu0 0.0
  %201 = vmatprep.subr.mxu0 0.0
  %202 = vmatpush1.msra.mxu0 0.0
  %203 = vmatprep.mubr.f32.mxu0 0.0
  %204 = vmatmul.mubr.f32.gmra.mrb[0].mxu0 %v137
  %v205 = vpop.f32.mrb[0].mxu0
  %v206 = vadd.f32 %v133, %v205
  %v207 = vpop.f32.mrb[0].mxu0
  %208 = vdwg.mxu0
  %vm209 = vcmp.gt.f32.partialorder %v206, 0.0
  %v210 = vstv %s36
  %v211 = vmul.f32 %v210, %v206
  %v212 = vsel %vm209, %v206, %v211
  %v213 = vld [vmem:[%s5] sm:$0xff]
  %v214 = vld [vmem:[%s5 + $0x8] sm:$0xff]
  %v215 = vld [vmem:[%s5 + $0x10] sm:$0xff]
  %v216 = vld [vmem:[%s5 + $0x18] sm:$0xff]
  %v217 = vld [vmem:[%s6] sm:$0x1]
  %v219 = vlaneseq
  %v220 = vshrl.u32 %v219, 7
  %v221 = vsub.s32 0, %v220
  %v222 = vrot.slane %v217, %v221
  %v225 = vsel %vm135, %v212, 0
  %227 = vmatprep.subr.mxu0 0.0
  %228 = vmatpush1.msra.mxu0 %v213
  %229 = vmatprep.subr.mxu0 0.0
  %230 = vmatpush1.msra.mxu0 %v214
  %231 = vmatprep.subr.mxu0 0.0
  %232 = vmatpush1.msra.mxu0 %v215
  %233 = vmatprep.subr.mxu0 0.0
  %234 = vmatpush1.msra.mxu0 %v216
  %235 = vmatprep.subr.mxu0 0.0
  %236 = vmatpush1.msra.mxu0 0.0
  %237 = vmatprep.subr.mxu0 0.0
  %238 = vmatpush1.msra.mxu0 0.0
  %239 = vmatprep.subr.mxu0 0.0
  %240 = vmatpush1.msra.mxu0 0.0
  %241 = vmatprep.subr.mxu0 0.0
  %242 = vmatpush1.msra.mxu0 0.0
  %243 = vmatprep.subr.mxu0 0.0
  %244 = vmatpush1.msra.mxu0 0.0
  %245 = vmatprep.subr.mxu0 0.0
  %246 = vmatpush1.msra.mxu0 0.0
  %247 = vmatprep.subr.mxu0 0.0
  %248 = vmatpush1.msra.mxu0 0.0
  %249 = vmatprep.subr.mxu0 0.0
  %250 = vmatpush1.msra.mxu0 0.0
  %251 = vmatprep.subr.mxu0 0.0
  %252 = vmatpush1.msra.mxu0 0.0
  %253 = vmatprep.subr.mxu0 0.0
  %254 = vmatpush1.msra.mxu0 0.0
  %255 = vmatprep.subr.mxu0 0.0
  %256 = vmatpush1.msra.mxu0 0.0
  %257 = vmatprep.subr.mxu0 0.0
  %258 = vmatpush1.msra.mxu0 0.0
  %259 = vmatprep.subr.mxu0 0.0
  %260 = vmatpush1.msra.mxu0 0.0
  %261 = vmatprep.subr.mxu0 0.0
  %262 = vmatpush1.msra.mxu0 0.0
  %263 = vmatprep.subr.mxu0 0.0
  %264 = vmatpush1.msra.mxu0 0.0
  %265 = vmatprep.subr.mxu0 0.0
  %266 = vmatpush1.msra.mxu0 0.0
  %267 = vmatprep.subr.mxu0 0.0
  %268 = vmatpush1.msra.mxu0 0.0
  %269 = vmatprep.subr.mxu0 0.0
  %270 = vmatpush1.msra.mxu0 0.0
  %271 = vmatprep.subr.mxu0 0.0
  %272 = vmatpush1.msra.mxu0 0.0
  %273 = vmatprep.subr.mxu0 0.0
  %274 = vmatpush1.msra.mxu0 0.0
  %275 = vmatprep.subr.mxu0 0.0
  %276 = vmatpush1.msra.mxu0 0.0
  %277 = vmatprep.subr.mxu0 0.0
  %278 = vmatpush1.msra.mxu0 0.0
  %279 = vmatprep.subr.mxu0 0.0
  %280 = vmatpush1.msra.mxu0 0.0
  %281 = vmatprep.subr.mxu0 0.0
  %282 = vmatpush1.msra.mxu0 0.0
  %283 = vmatprep.subr.mxu0 0.0
  %284 = vmatpush1.msra.mxu0 0.0
  %285 = vmatprep.subr.mxu0 0.0
  %286 = vmatpush1.msra.mxu0 0.0
  %287 = vmatprep.subr.mxu0 0.0
  %288 = vmatpush1.msra.mxu0 0.0
  %289 = vmatprep.subr.mxu0 0.0
  %290 = vmatpush1.msra.mxu0 0.0
  %291 = vmatprep.mubr.f32.mxu0 0.0
  %292 = vmatmul.mubr.f32.gmra.mrb[0].mxu0 %v225
  %v293 = vpop.f32.mrb[0].mxu0
  %v294 = vadd.f32 %v222, %v293
  %v295 = vpop.f32.mrb[0].mxu0
  %296 = vdwg.mxu0
  %297 = vst [vmem:[%s9] sm:$0xff] %v294
  // Predicated region
  $region38: #{critic_forward.1} parent=0 // pred_check
    _
  $region39: #{critic_forward.1} parent=0 // pred_check_branch
    %299 = sbr.rel (0) target = $region41
  $region40: #{critic_forward.1} parent=0 // pred_region
    _
  $region41: #{critic_forward.1} parent=0 // pred_fallthru
    _
  // Predicated region
  $region42: #{critic_forward.1} parent=0 // pred_check
    _
  $region43: #{critic_forward.1} parent=0 // pred_check_branch
    %301 = sbr.rel (0) target = $region45
  $region44: #{critic_forward.1} parent=0 // pred_region
    _
  $region45: #{critic_forward.1} parent=0 // pred_fallthru
    _

</llo_original>
